<compile_context>
chip_gen: v5e
topology: v5e:2x2
jax: 0.10.0
libtpu: 0.0.40
codegen_flags: <defaults>
</compile_context>

<pallas_src>
import functools

import numpy as np

import jax
import jax.numpy as jnp
from jax.experimental import pallas as pl
from jax.experimental.pallas import tpu as pltpu


# ----------------------------------------------------------------------------
# Host-side helpers
# ----------------------------------------------------------------------------

@functools.lru_cache(maxsize=None)
def _band_matrix_np(L, kernel_size):
    """(L, L) matrix of integer band counts: (A @ x) / k == edge-replicated avg."""
    pad = (kernel_size - 1) // 2
    idx = np.clip(np.arange(L)[:, None] + np.arange(-pad, pad + 1)[None, :], 0, L - 1)
    a = np.zeros((L, L), dtype=np.float32)
    np.add.at(a, (np.repeat(np.arange(L), kernel_size), idx.ravel()), 1.0)
    return a


def _vmem_capacity_bytes():
    try:
        cap = getattr(pltpu.get_tpu_info(), "vmem_capacity_bytes", None)
        if cap:
            return int(cap)
    except Exception:
        pass
    return 64 << 20  # conservative default (v7x per-TensorCore)


def _pick_divisor(n, cap):
    cap = max(1, min(n, int(cap)))
    for d in range(cap, 0, -1):
        if n % d == 0:
            return d
    return 1


def _choose_tiles(B, L, C, itemsize, target_block_bytes):
    """(batch_tile, channel_tile) for (bt, L, ct) blocks."""
    row_bytes = max(1, L * C * itemsize)
    if row_bytes > target_block_bytes:
        # A single batch row already exceeds the target: tile channels instead.
        # Lane axis stays a multiple of 128; no halo needed (average is along L).
        lanes = max(1, target_block_bytes // max(1, L * 128 * itemsize))
        return 1, min(C, 128 * lanes)
    bt = _pick_divisor(B, min(8, target_block_bytes // row_bytes))
    # Keep >= 4 grid steps when the batch allows it (DMA/compute overlap and
    # both v7x TensorCores); neutral for single-core v5e/v6e.
    target_steps = min(4, B)
    while bt > 1 and (B // bt) < target_steps:
        bt = _pick_divisor(B, bt - 1)
    ct = C
    if (B // bt) < 4 and C >= 256:
        # Tiny batch (e.g. B == 1): split channels to restore grid steps.
        splits = max(1, 4 // max(1, B // bt))
        ct = 128 * max(1, (C // 128) // splits)
    return bt, ct


# ----------------------------------------------------------------------------
# Kernels
# ----------------------------------------------------------------------------

def _decomp_matmul_kernel(a_ref, x_ref, res_ref, mean_ref, *, inv_k):
    """MXU path: mean[b] = (A @ x[b]) * inv_k for each batch row in the block."""
    a = a_ref[...]                                  # (L, L) integer band counts
    bt = x_ref.shape[0]
    for b in range(bt):                             # bt is small and static
        xb = x_ref[b]                               # (L, Ct)
        mean = jnp.dot(a, xb.astype(a.dtype),
                       preferred_element_type=jnp.float32) * inv_k
        mean_ref[b] = mean.astype(mean_ref.dtype)
        res_ref[b] = (xb.astype(jnp.float32) - mean).astype(res_ref.dtype)


def _decomp_tap_kernel(x_ref, res_ref, mean_ref, *, kernel_size):
    """Fallback for sequences where the (L, L) band matrix can't stay VMEM-resident."""
    # TODO(synk): replace the shifted-concatenate taps with pltpu.roll +
    # iota-masked edge fixes; kept as the simple proven form for this rare path.
    pad = (kernel_size - 1) // 2
    inv_k = 1.0 / kernel_size
    bt, L, ct = x_ref.shape
    for b in range(bt):
        xb = x_ref[b]                               # (L, Ct)
        xf = xb.astype(jnp.float32)
        if pad == 0:
            mean = xf
        else:
            head = xb[0:1, :]
            tail = xb[L - 1:L, :]
            acc = xf
            for d in range(1, pad + 1):
                take = min(d, L)
                rep_t = jnp.broadcast_to(tail, (take, ct))
                rep_h = jnp.broadcast_to(head, (take, ct))
                if take == L:
                    fwd, bwd = rep_t, rep_h
                else:
                    fwd = jnp.concatenate([xb[take:, :], rep_t], axis=0)
                    bwd = jnp.concatenate([rep_h, xb[:L - take, :]], axis=0)
                acc = acc + fwd.astype(jnp.float32) + bwd.astype(jnp.float32)
            mean = acc * inv_k
        mean_ref[b] = mean.astype(mean_ref.dtype)
        res_ref[b] = (xf - mean).astype(res_ref.dtype)


# ----------------------------------------------------------------------------
# Wrapper
# ----------------------------------------------------------------------------

def series_decomp(x, kernel_size, *, _force_tap_path=False):
    """x: (B, L, C). Returns (res, moving_mean), both (B, L, C).

    Matches the PyTorch series_decomp forward (edge-replicated moving average,
    stride 1).  Requires odd kernel_size, as used by SegRNN.
    """
    assert kernel_size % 2 == 1, "kernel_size must be odd for length-preserving decomp"
    B, L, C = x.shape
    pad = (kernel_size - 1) // 2
    itemsize = x.dtype.itemsize

    vmem_capacity = _vmem_capacity_bytes()
    # v7x: 64 MiB/TC -> smaller blocks, limit capped well under capacity.
    # v5e/v6e: 128 MiB and HBM-bound -> fatter blocks to amortize step overhead.
    target_block = (2 << 20) if vmem_capacity <= (64 << 20) else (4 << 20)
    vmem_cap = int(max(32 << 20, min(vmem_capacity - (16 << 20), 96 << 20)))

    bt, ct = _choose_tiles(B, L, C, itemsize, target_block)
    grid = (pl.cdiv(B, bt), pl.cdiv(C, ct))

    if x.dtype == jnp.float32 or x.dtype == jnp.bfloat16:
        a_dtype = x.dtype                # band counts are exact in bf16 up to 256
    else:
        a_dtype = jnp.float32
    a_bytes = L * L * np.dtype(a_dtype).itemsize
    use_matmul = (not _force_tap_path) and pad > 0 and 2 * a_bytes <= (8 << 20)

    blk_in = bt * L * ct * itemsize
    row_f32 = L * ct * 4
    if use_matmul:
        need = 2 * a_bytes + 6 * blk_in + 6 * row_f32 + (4 << 20)
    else:
        need = 6 * blk_in + (2 * min(pad, L) + 8) * row_f32 + (4 << 20)
    vmem_limit = int(min(vmem_cap, max(32 << 20, need)))

    blk_spec = pl.BlockSpec((bt, L, ct), lambda bi, ci: (bi, 0, ci))
    out_shape = (jax.ShapeDtypeStruct((B, L, C), x.dtype),
                 jax.ShapeDtypeStruct((B, L, C), x.dtype))

    if use_matmul:
        a = jnp.asarray(_band_matrix_np(L, kernel_size), dtype=a_dtype)
        kernel = functools.partial(_decomp_matmul_kernel, inv_k=1.0 / kernel_size)
        in_specs = [pl.BlockSpec((L, L), lambda bi, ci: (0, 0)),  # VMEM-resident A
                    blk_spec]
        operands = (a, x)
    else:
        kernel = functools.partial(_decomp_tap_kernel, kernel_size=kernel_size)
        in_specs = [blk_spec]
        operands = (x,)

    # NOTE: input_output_aliases={len(in_specs) - 1: 0} would let `res` reuse x's
    # HBM buffer (footprint only), but requires the caller to donate x; left off.
    res, mean = pl.pallas_call(
        kernel,
        out_shape=out_shape,
        grid_spec=pltpu.PrefetchScalarGridSpec(
            num_scalar_prefetch=0,
            grid=grid,
            in_specs=in_specs,
            out_specs=[blk_spec, blk_spec],
        ),
        compiler_params=pltpu.CompilerParams(
            dimension_semantics=("parallel", "parallel"),
            vmem_limit_bytes=vmem_limit,
        ),
    )(*operands)
    return res, mean


# ----------------------------------------------------------------------------
# Reference + self-test
# ----------------------------------------------------------------------------

def _reference_series_decomp(x, kernel_size):
    """Pure-JAX reference mirroring the PyTorch forward (edge-replicated avg pool)."""
    pad = (kernel_size - 1) // 2
    L = x.shape[1]
    idx = jnp.clip(
        jnp.arange(L)[:, None] + jnp.arange(-pad, pad + 1)[None, :], 0, L - 1)
    windows = x[:, idx, :]                          # (B, L, k, C)
    mean = jnp.mean(windows, axis=2)
    return x - mean, mean


if __name__ == "__main__":
    B, L, C = 4, 32, 8
    key = jax.random.PRNGKey(0)

    # kernel_size 5 and 25 exercise the MXU banded-matmul path (25 is the SegRNN
    # default); the last case forces the shifted-tap fallback used only when the
    # band matrix is too large to keep VMEM-resident.
    for kernel_size, force_tap in ((5, False), (25, False), (7, True)):
        key, sub = jax.random.split(key)
        x = jax.random.normal(sub, (B, L, C), dtype=jnp.float32)

        res_ref, mean_ref = _reference_series_decomp(x, kernel_size)
        res, mean = series_decomp(x, kernel_size, _force_tap_path=force_tap)
        res = jax.block_until_ready(res)
        mean = jax.block_until_ready(mean)

        assert jnp.allclose(mean, mean_ref, atol=1e-5, rtol=1e-5), kernel_size
        assert jnp.allclose(res, res_ref, atol=1e-5, rtol=1e-5), kernel_size

    print("KERNEL_OK")
</pallas_src>

<mosaic_0001>
module attributes {stable_mosaic.version = 11 : i64} {
  func.func @_decomp_matmul_kernel(%arg0: i32, %arg1: i32, %arg2: memref<32x32xf32, #tpu.memory_space<vmem>>, %arg3: memref<1x32x8xf32, #tpu.memory_space<vmem>>, %arg4: memref<1x32x8xf32, #tpu.memory_space<vmem>>, %arg5: memref<1x32x8xf32, #tpu.memory_space<vmem>>) attributes {dimension_semantics = [#tpu.dimension_semantics<parallel>, #tpu.dimension_semantics<parallel>], iteration_bounds = array<i64: 4, 1>, scalar_prefetch = 0 : i64, scratch_operands = 0 : i64, tpu.core_type = #tpu.core_type<tc>, window_params = [{pipeline_mode = #tpu.pipeline_mode<synchronous>, transform_indices = @transform_0, window_bounds = array<i64: 32, 32>}, {transform_indices = @transform_1, window_bounds = array<i64: 1, 32, 8>}, {transform_indices = @transform_2, window_bounds = array<i64: 1, 32, 8>}, {transform_indices = @transform_3, window_bounds = array<i64: 1, 32, 8>}]} {
    %c0 = arith.constant 0 : index
    %c0_0 = arith.constant 0 : index
    %0 = vector.load %arg2[%c0, %c0_0] : memref<32x32xf32, #tpu.memory_space<vmem>>, vector<32x32xf32>
    %c0_1 = arith.constant 0 : index
    %c0_2 = arith.constant 0 : index
    %c0_3 = arith.constant 0 : index
    %1 = vector.load %arg3[%c0_1, %c0_2, %c0_3] : memref<1x32x8xf32, #tpu.memory_space<vmem>>, vector<1x32x8xf32>
    %2 = vector.shape_cast %1 : vector<1x32x8xf32> to vector<32x8xf32>
    %cst = arith.constant dense<0.000000e+00> : vector<32x8xf32>
    %3 = tpu.matmul %0, %2, %cst {dimension_numbers = #tpu.dot_dimension_numbers<[1], [0], [0], [1], [0, 0, 1, 1], [], []>} : vector<32x32xf32>, vector<32x8xf32>, vector<32x8xf32> -> vector<32x8xf32>
    %cst_4 = arith.constant 2.000000e-01 : f32
    %4 = vector.broadcast %cst_4 : f32 to vector<32x8xf32>
    %5 = arith.mulf %3, %4 : vector<32x8xf32>
    %c0_5 = arith.constant 0 : index
    %c0_6 = arith.constant 0 : index
    %c0_7 = arith.constant 0 : index
    %6 = vector.load %arg5[%c0_5, %c0_6, %c0_7] : memref<1x32x8xf32, #tpu.memory_space<vmem>>, vector<1x32x8xf32>
    %7 = vector.shape_cast %6 : vector<1x32x8xf32> to vector<32x8xf32>
    %8 = vector.shape_cast %5 : vector<32x8xf32> to vector<1x32x8xf32>
    tpu.vector_store %arg5[%c0_5, %c0_6, %c0_7], %8 {strides = array<i32>} : memref<1x32x8xf32, #tpu.memory_space<vmem>>, vector<1x32x8xf32>,
    %9 = arith.subf %2, %5 : vector<32x8xf32>
    %c0_8 = arith.constant 0 : index
    %c0_9 = arith.constant 0 : index
    %c0_10 = arith.constant 0 : index
    %10 = vector.load %arg4[%c0_8, %c0_9, %c0_10] : memref<1x32x8xf32, #tpu.memory_space<vmem>>, vector<1x32x8xf32>
    %11 = vector.shape_cast %10 : vector<1x32x8xf32> to vector<32x8xf32>
    %12 = vector.shape_cast %9 : vector<32x8xf32> to vector<1x32x8xf32>
    tpu.vector_store %arg4[%c0_8, %c0_9, %c0_10], %12 {strides = array<i32>} : memref<1x32x8xf32, #tpu.memory_space<vmem>>, vector<1x32x8xf32>,
    return
  }
  func.func @transform_0(%arg0: i32, %arg1: i32) -> (i32, i32) {
    %c0_i32 = arith.constant 0 : i32
    %c0_i32_0 = arith.constant 0 : i32
    %c0_i32_1 = arith.constant 0 : i32
    return %c0_i32, %c0_i32_0 : i32, i32
  }
  func.func @transform_1(%arg0: i32, %arg1: i32) -> (i32, i32, i32) {
    %c0_i32 = arith.constant 0 : i32
    %c0_i32_0 = arith.constant 0 : i32
    return %arg0, %c0_i32, %arg1 : i32, i32, i32
  }
  func.func @transform_2(%arg0: i32, %arg1: i32) -> (i32, i32, i32) {
    %c0_i32 = arith.constant 0 : i32
    %c0_i32_0 = arith.constant 0 : i32
    return %arg0, %c0_i32, %arg1 : i32, i32, i32
  }
  func.func @transform_3(%arg0: i32, %arg1: i32) -> (i32, i32, i32) {
    %c0_i32 = arith.constant 0 : i32
    %c0_i32_0 = arith.constant 0 : i32
    return %arg0, %c0_i32, %arg1 : i32, i32, i32
  }
}

</mosaic_0001>

<llo_original>
// kernel: tpu_custom_call.1
$region0: #{tpu_custom_call.1}
  #allocation0 [shape = 'u32[]', space=smem, size = 0x4, offset = 0x4, fixed_abs, tag = 'smem constant byte address 0x4 - core index']
  #allocation1 [shape = 'u32[72,128]{1,0:T(1,128)}', space=vmem, size = 0x9000, scoped, tag = 'internal scratch']
  %s0 = inlined_call_operand.vmem [shape: f32[32,32], index: 0, kind: input, shape index: {}]
  %s1 = inlined_call_operand.vmem [shape: f32[4,32,8], index: 1, kind: input, shape index: {}]
  %s2 = inlined_call_operand.vmem [shape: f32[4,32,8], index: 2, kind: output, shape index: {0}]
  %s3 = inlined_call_operand.vmem [shape: f32[4,32,8], index: 3, kind: output, shape index: {1}]
  %4 = xla_tuple %s2, %s3
  %s5 = sld [smem:[#allocation0]]
  $region49: #{tpu_custom_call.1} parent=0
    _
  %s7 = ssub.s32 1, %s5
  %s8 = scalar_select 0, %s7, %s5
  loop: start=0, step=1, limit=6
  $region2: #{tpu_custom_call.1} parent=0 // loop_pre_header
    _
  $region3: #{tpu_custom_call.1} parent=0 // loop_header
    %s10 = sphi 0, %s14
    %p11 = scmp.ge.s32.totalorder %s10, 6
    %s17 = sphi 0, %s29
    %s18 = sphi 0, %s25
    %s19 = sphi 0, %s17
    %s20 = sphi 0, %s18
    %s21 = sphi 0, %s19
    %s22 = sphi 0, %s20
    %s30 = sphi 0, %s30
    %s32 = sphi 0, %s30
    %s33 = sphi 0, %s32
    %s47 = sphi 0, %s33
    %s55 = sphi 0, %s57
    %s58 = sphi 0, %s55
    %s59 = sphi 0, %s58
    %s75 = sphi 0, %s59
    %s83 = sphi 0, %s85
    %s86 = sphi 0, %s83
    %s87 = sphi 0, %s86
    %s103 = sphi 0, %s87
    %s111 = sphi 0, %s113
    %s114 = sphi 0, %s111
    %s115 = sphi 0, %s114
    %s131 = sphi 0, %s115
  $region4: #{tpu_custom_call.1} parent=0 // loop_header_branch
    %13 = sbr.rel (%p11) target = $region8
  $region5: #{tpu_custom_call.1} parent=0 // loop_body
    %s15 = ssub.s32 %s10, 1
    %s16 = ssub.s32 %s10, 2
    %s23 = sadd.s32 1, %s18
    %p24 = scmp.ge.s32.totalorder %s23, 1
    %s25 = scalar_select %p24, 0, %s23
    %s26 = sadd.s32 1, %s17
    %s27 = scalar_select %p24, %s26, %s17
    %p28 = scmp.ge.s32.totalorder %s27, 4
    %s29 = scalar_select %p28, 0, %s27
    %s31 = sadd.s32 %s30, 1
    %p34 = scmp.eq.s32.totalorder %s10, 3
    %p35 = scmp.ne.s32.totalorder %s30, %s32
    %p36 = scmp.eq.s32.totalorder %s10, 0
    %p37 = por %p35, %p36
    %p38 = scmp.ne.s32.totalorder %s30, %s32
    %p39 = scmp.eq.s32.totalorder %s15, 3
    %p40 = por %p38, %p39
    %p41 = scmp.ne.s32.totalorder %s32, %s33
    %p42 = scmp.eq.s32.totalorder %s15, 0
    %p43 = por %p41, %p42
    %p44 = scmp.ne.s32.totalorder %s32, %s33
    %p45 = scmp.eq.s32.totalorder %s16, 3
    %p46 = por %p44, %p45
    %p48 = scmp.ne.s32.totalorder %s33, %s47
    %p49 = scmp.eq.s32.totalorder %s16, 0
    %p50 = por %p48, %p49
    %s51 = ssub.s32 %s17, %s29
    %s52 = ssub.s32 %s18, %s25
    %s53 = sor.u32 %s51, %s52
    %p54 = scmp.eq.s32.totalorder %s53, 0
    %s56 = sadd.s32 %s55, 1
    %s57 = scalar_select %p54, %s55, %s56
    %p60 = pneg %p54
    %p61 = scmp.eq.s32.totalorder %s10, 3
    %p62 = por %p60, %p61
    %p63 = scmp.ne.s32.totalorder %s55, %s58
    %p64 = scmp.eq.s32.totalorder %s10, 0
    %p65 = por %p63, %p64
    %p66 = scmp.ne.s32.totalorder %s55, %s58
    %p67 = scmp.eq.s32.totalorder %s15, 3
    %p68 = por %p66, %p67
    %p69 = scmp.ne.s32.totalorder %s58, %s59
    %p70 = scmp.eq.s32.totalorder %s15, 0
    %p71 = por %p69, %p70
    %p72 = scmp.ne.s32.totalorder %s58, %s59
    %p73 = scmp.eq.s32.totalorder %s16, 3
    %p74 = por %p72, %p73
    %p76 = scmp.ne.s32.totalorder %s59, %s75
    %p77 = scmp.eq.s32.totalorder %s16, 0
    %p78 = por %p76, %p77
    %s79 = ssub.s32 %s17, %s29
    %s80 = ssub.s32 %s18, %s25
    %s81 = sor.u32 %s79, %s80
    %p82 = scmp.eq.s32.totalorder %s81, 0
    %s84 = sadd.s32 %s83, 1
    %s85 = scalar_select %p82, %s83, %s84
    %p88 = pneg %p82
    %p89 = scmp.eq.s32.totalorder %s10, 3
    %p90 = por %p88, %p89
    %p91 = scmp.ne.s32.totalorder %s83, %s86
    %p92 = scmp.eq.s32.totalorder %s10, 0
    %p93 = por %p91, %p92
    %p94 = scmp.ne.s32.totalorder %s83, %s86
    %p95 = scmp.eq.s32.totalorder %s15, 3
    %p96 = por %p94, %p95
    %p97 = scmp.ne.s32.totalorder %s86, %s87
    %p98 = scmp.eq.s32.totalorder %s15, 0
    %p99 = por %p97, %p98
    %p100 = scmp.ne.s32.totalorder %s86, %s87
    %p101 = scmp.eq.s32.totalorder %s16, 3
    %p102 = por %p100, %p101
    %p104 = scmp.ne.s32.totalorder %s87, %s103
    %p105 = scmp.eq.s32.totalorder %s16, 0
    %p106 = por %p104, %p105
    %s107 = ssub.s32 %s17, %s29
    %s108 = ssub.s32 %s18, %s25
    %s109 = sor.u32 %s107, %s108
    %p110 = scmp.eq.s32.totalorder %s109, 0
    %s112 = sadd.s32 %s111, 1
    %s113 = scalar_select %p110, %s111, %s112
    %p116 = pneg %p110
    %p117 = scmp.eq.s32.totalorder %s10, 3
    %p118 = por %p116, %p117
    %p119 = scmp.ne.s32.totalorder %s111, %s114
    %p120 = scmp.eq.s32.totalorder %s10, 0
    %p121 = por %p119, %p120
    %p122 = scmp.ne.s32.totalorder %s111, %s114
    %p123 = scmp.eq.s32.totalorder %s15, 3
    %p124 = por %p122, %p123
    %p125 = scmp.ne.s32.totalorder %s114, %s115
    %p126 = scmp.eq.s32.totalorder %s15, 0
    %p127 = por %p125, %p126
    %p128 = scmp.ne.s32.totalorder %s114, %s115
    %p129 = scmp.eq.s32.totalorder %s16, 3
    %p130 = por %p128, %p129
    %p132 = scmp.ne.s32.totalorder %s115, %s131
    %p133 = scmp.eq.s32.totalorder %s16, 0
    %p134 = por %p132, %p133
    %p135 = scmp.le.s32.totalorder 1, %s10
    %p136 = scmp.lt.s32.totalorder %s10, 5
    %p137 = pnand %p135, %p136
    %p138 = pneg %p137
    // Predicated region
    $region9: #{tpu_custom_call.1} parent=5 // pred_check
      _
    $region10: #{tpu_custom_call.1} parent=5 // pred_check_branch
      %140 = sbr.rel (%p137) target = $region12
    $region11: #{tpu_custom_call.1} parent=5 // pred_region
      %s141 = ssub.s32 %s10, 1
      // Predicated region
      $region13: #{tpu_custom_call.1} parent=11 // pred_check
        %p142 = pneg %p43
      $region14: #{tpu_custom_call.1} parent=11 // pred_check_branch
        %144 = sbr.rel (%p142) target = $region16
      $region15: #{tpu_custom_call.1} parent=11 // pred_region
        _
      $region16: #{tpu_custom_call.1} parent=11 // pred_fallthru
        _
    $region12: #{tpu_custom_call.1} parent=5 // pred_fallthru
      _
    %p145 = scmp.lt.s32.totalorder %s10, 4
    // Predicated region
    $region17: #{tpu_custom_call.1} parent=5 // pred_check
      %p146 = pneg %p145
    $region18: #{tpu_custom_call.1} parent=5 // pred_check_branch
      %148 = sbr.rel (%p146) target = $region20
    $region19: #{tpu_custom_call.1} parent=5 // pred_region
      // Predicated region
      $region21: #{tpu_custom_call.1} parent=19 // pred_check
        %p149 = pneg %p65
      $region22: #{tpu_custom_call.1} parent=19 // pred_check_branch
        %151 = sbr.rel (%p149) target = $region24
      $region23: #{tpu_custom_call.1} parent=19 // pred_region
        %p152 = scmp.lt.s32.totalorder %s17, 3
        %s153 = scalar_select %p152, %s17, 3
        %p154 = scmp.lt.s32.totalorder %s18, 0
        %s155 = scalar_select %p154, %s18, 0
        %s156 = smul.addr %s153, 4
        %s157 = sadd.s32 %s155, %s156
        %s158 = smul.addr %s157, 8
        %s159 = scalar_lea.vmem %s1, %s158
      $region24: #{tpu_custom_call.1} parent=19 // pred_fallthru
        _
    $region20: #{tpu_custom_call.1} parent=5 // pred_fallthru
      _
    %p160 = scmp.le.s32.totalorder 1, %s10
    %p161 = scmp.lt.s32.totalorder %s10, 5
    %p162 = pnand %p160, %p161
    %p163 = pneg %p162
    // Predicated region
    $region25: #{tpu_custom_call.1} parent=5 // pred_check
      _
    $region26: #{tpu_custom_call.1} parent=5 // pred_check_branch
      %165 = sbr.rel (%p162) target = $region28
    $region27: #{tpu_custom_call.1} parent=5 // pred_region
      %s166 = ssub.s32 %s10, 1
      %p167 = pneg %p43
      %p168 = pneg %p40
      %p169 = scmp.lt.s32.totalorder %s19, 3
      %s170 = scalar_select %p169, %s19, 3
      %p171 = scmp.lt.s32.totalorder %s20, 0
      %s172 = scalar_select %p171, %s20, 0
      %s173 = smul.addr %s170, 4
      %s174 = sadd.s32 %s172, %s173
      %s175 = smul.addr %s174, 8
      %s176 = scalar_lea.vmem %s1, %s175
      %p177 = pneg %p71
      %p178 = pneg %p68
      %p179 = pneg %p99
      %p180 = pneg %p96
      %p181 = scmp.lt.s32.totalorder %s19, 3
      %s182 = scalar_select %p181, %s19, 3
      %p183 = scmp.lt.s32.totalorder %s20, 0
      %s184 = scalar_select %p183, %s20, 0
      %s185 = smul.addr %s182, 4
      %s186 = sadd.s32 %s184, %s185
      %s187 = smul.addr %s186, 8
      %s188 = scalar_lea.vmem %s2, %s187
      %p189 = pneg %p127
      %p190 = pneg %p124
      %p191 = scmp.lt.s32.totalorder %s19, 3
      %s192 = scalar_select %p191, %s19, 3
      %p193 = scmp.lt.s32.totalorder %s20, 0
      %s194 = scalar_select %p193, %s20, 0
      %s195 = smul.addr %s192, 4
      %s196 = sadd.s32 %s194, %s195
      %s197 = smul.addr %s196, 8
      %s198 = scalar_lea.vmem %s3, %s197
      %p199 = scmp.lt.s32.totalorder %s19, 3
      %s200 = scalar_select %p199, %s19, 3
      %p201 = scmp.lt.s32.totalorder %s20, 0
      %s202 = scalar_select %p201, %s20, 0
      %s203 = smul.addr %s200, 4
      %s204 = sadd.s32 %s202, %s203
      %s205 = smul.addr %s204, 8
      %s206 = scalar_lea.vmem %s1, %s205
      %p207 = scmp.lt.s32.totalorder %s19, 3
      %s208 = scalar_select %p207, %s19, 3
      %p209 = scmp.lt.s32.totalorder %s20, 0
      %s210 = scalar_select %p209, %s20, 0
      %s211 = smul.addr %s208, 4
      %s212 = sadd.s32 %s210, %s211
      %s213 = smul.addr %s212, 8
      %s214 = scalar_lea.vmem %s2, %s213
      %p215 = scmp.lt.s32.totalorder %s19, 3
      %s216 = scalar_select %p215, %s19, 3
      %p217 = scmp.lt.s32.totalorder %s20, 0
      %s218 = scalar_select %p217, %s20, 0
      %s219 = smul.addr %s216, 4
      %s220 = sadd.s32 %s218, %s219
      %s221 = smul.addr %s220, 8
      %s222 = scalar_lea.vmem %s3, %s221
      %v223 = vld [vmem:[%s0] sm:$0xff]
      %v224 = vld [vmem:[%s0 + $0x8] sm:$0xff]
      %v225 = vld [vmem:[%s0 + $0x10] sm:$0xff]
      %v226 = vld [vmem:[%s0 + $0x18] sm:$0xff]
      %v227 = vld [vmem:[%s206] sm:$0xff]
      %v228 = vld [vmem:[%s206 + $0x8] sm:$0xff]
      %v229 = vld [vmem:[%s206 + $0x10] sm:$0xff]
      %v230 = vld [vmem:[%s206 + $0x18] sm:$0xff]
      %vm231 = vcmask 261120
      %v233 = vsel %vm231, %v223, 0
      %v236 = vsel %vm231, %v224, 0
      %v239 = vsel %vm231, %v225, 0
      %v242 = vsel %vm231, %v226, 0
      %244 = vmatpush.msra.mxu0 0.0
      %245 = vmatpush.msra.mxu0 0.0
      %246 = vmatpush.msra.mxu0 0.0
      %247 = vmatpush.msra.mxu0 0.0
      %248 = vmatpush.msra.mxu0 0.0
      %249 = vmatpush.msra.mxu0 0.0
      %250 = vmatpush.msra.mxu0 0.0
      %251 = vmatpush.msra.mxu0 0.0
      %252 = vmatpush.msra.mxu0 0.0
      %253 = vmatpush.msra.mxu0 0.0
      %254 = vmatpush.msra.mxu0 0.0
      %255 = vmatpush.msra.mxu0 0.0
      %256 = vmatpush.msra.mxu0 %v230
      %257 = vmatpush.msra.mxu0 %v229
      %258 = vmatpush.msra.mxu0 %v228
      %259 = vmatpush.msra.mxu0 %v227
      %260 = vmatmul.f32.gmra.mxu0 %v233
      %v261 = vpop.f32.mrf.mxu0
      %v262 = vadd.f32 0.0, %v261
      %263 = vmatmul.f32.gmra.mxu0 %v236
      %v264 = vpop.f32.mrf.mxu0
      %v265 = vadd.f32 0.0, %v264
      %266 = vmatmul.f32.gmra.mxu0 %v239
      %v267 = vpop.f32.mrf.mxu0
      %v268 = vadd.f32 0.0, %v267
      %269 = vmatmul.f32.gmra.mxu0 %v242
      %v270 = vpop.f32.mrf.mxu0
      %v271 = vadd.f32 0.0, %v270
      %272 = vdwg.mxu0
      %v273 = vmul.f32 %v262, 0.2
      %v274 = vmul.f32 %v265, 0.2
      %v275 = vmul.f32 %v268, 0.2
      %v276 = vmul.f32 %v271, 0.2
      %vm277 = vcmask 64512
      %278 = vst.msk [vmem:[%s222] sm:$0xff] %vm277, %v273
      %279 = vst.msk [vmem:[%s222 + $0x8] sm:$0xff] %vm277, %v274
      %280 = vst.msk [vmem:[%s222 + $0x10] sm:$0xff] %vm277, %v275
      %281 = vst.msk [vmem:[%s222 + $0x18] sm:$0xff] %vm277, %v276
      %v282 = vsub.f32 %v227, %v273
      %v283 = vsub.f32 %v228, %v274
      %v284 = vsub.f32 %v229, %v275
      %v285 = vsub.f32 %v230, %v276
      %286 = vst.msk [vmem:[%s214] sm:$0xff] %vm277, %v282
      %287 = vst.msk [vmem:[%s214 + $0x8] sm:$0xff] %vm277, %v283
      %288 = vst.msk [vmem:[%s214 + $0x10] sm:$0xff] %vm277, %v284
      %289 = vst.msk [vmem:[%s214 + $0x18] sm:$0xff] %vm277, %v285
      %p290 = scmp.lt.s32.totalorder %s19, 3
      %s291 = scalar_select %p290, %s19, 3
      %p292 = scmp.lt.s32.totalorder %s20, 0
      %s293 = scalar_select %p292, %s20, 0
      %s294 = smul.addr %s291, 4
      %s295 = sadd.s32 %s293, %s294
      %s296 = smul.addr %s295, 8
      %s297 = scalar_lea.vmem %s2, %s296
      %p298 = scmp.lt.s32.totalorder %s19, 3
      %s299 = scalar_select %p298, %s19, 3
      %p300 = scmp.lt.s32.totalorder %s20, 0
      %s301 = scalar_select %p300, %s20, 0
      %s302 = smul.addr %s299, 4
      %s303 = sadd.s32 %s301, %s302
      %s304 = smul.addr %s303, 8
      %s305 = scalar_lea.vmem %s3, %s304
      // Predicated region
      $region29: #{tpu_custom_call.1} parent=27 // pred_check
        %p306 = pneg %p96
      $region30: #{tpu_custom_call.1} parent=27 // pred_check_branch
        %308 = sbr.rel (%p306) target = $region32
      $region31: #{tpu_custom_call.1} parent=27 // pred_region
        _
      $region32: #{tpu_custom_call.1} parent=27 // pred_fallthru
        _
      // Predicated region
      $region33: #{tpu_custom_call.1} parent=27 // pred_check
        %p309 = pneg %p124
      $region34: #{tpu_custom_call.1} parent=27 // pred_check_branch
        %311 = sbr.rel (%p309) target = $region36
      $region35: #{tpu_custom_call.1} parent=27 // pred_region
        _
      $region36: #{tpu_custom_call.1} parent=27 // pred_fallthru
        _
    $region28: #{tpu_custom_call.1} parent=5 // pred_fallthru
      _
    %p312 = scmp.le.s32.totalorder 2, %s10
    // Predicated region
    $region37: #{tpu_custom_call.1} parent=5 // pred_check
      %p313 = pneg %p312
    $region38: #{tpu_custom_call.1} parent=5 // pred_check_branch
      %315 = sbr.rel (%p313) target = $region40
    $region39: #{tpu_custom_call.1} parent=5 // pred_region
      %s316 = ssub.s32 %s10, 2
      // Predicated region
      $region41: #{tpu_custom_call.1} parent=39 // pred_check
        %p317 = pneg %p102
      $region42: #{tpu_custom_call.1} parent=39 // pred_check_branch
        %319 = sbr.rel (%p317) target = $region44
      $region43: #{tpu_custom_call.1} parent=39 // pred_region
        %p320 = scmp.lt.s32.totalorder %s21, 3
        %s321 = scalar_select %p320, %s21, 3
        %p322 = scmp.lt.s32.totalorder %s22, 0
        %s323 = scalar_select %p322, %s22, 0
        %s324 = smul.addr %s321, 4
        %s325 = sadd.s32 %s323, %s324
        %s326 = smul.addr %s325, 8
        %s327 = scalar_lea.vmem %s2, %s326
      $region44: #{tpu_custom_call.1} parent=39 // pred_fallthru
        _
      // Predicated region
      $region45: #{tpu_custom_call.1} parent=39 // pred_check
        %p328 = pneg %p130
      $region46: #{tpu_custom_call.1} parent=39 // pred_check_branch
        %330 = sbr.rel (%p328) target = $region48
      $region47: #{tpu_custom_call.1} parent=39 // pred_region
        %p331 = scmp.lt.s32.totalorder %s21, 3
        %s332 = scalar_select %p331, %s21, 3
        %p333 = scmp.lt.s32.totalorder %s22, 0
        %s334 = scalar_select %p333, %s22, 0
        %s335 = smul.addr %s332, 4
        %s336 = sadd.s32 %s334, %s335
        %s337 = smul.addr %s336, 8
        %s338 = scalar_lea.vmem %s3, %s337
      $region48: #{tpu_custom_call.1} parent=39 // pred_fallthru
        _
    $region40: #{tpu_custom_call.1} parent=5 // pred_fallthru
      _
  $region6: #{tpu_custom_call.1} parent=0 // loop_footer
    %s14 = sadd.s32 1, %s10
  $region7: #{tpu_custom_call.1} parent=0 // loop_footer_branch
    %9 = sbr.rel target = $region3
  $region8: #{tpu_custom_call.1} parent=0 // loop_exit
    _

</llo_original>
